<compile_context>
chip_gen: v6e
topology: v6e:2x2x1
jax: 0.10.0
libtpu: 0.0.40
codegen_flags: <defaults>
</compile_context>

<pallas_src>
import math
import functools

import jax
import jax.numpy as jnp
from jax.experimental import pallas as pl
from jax.experimental.pallas import tpu as pltpu

BN_EPS = 1e-5
_SQRT2 = math.sqrt(2.0)


def _gelu(x, approximate=False):
    # nn.GELU() default is the exact erf formulation; tanh approximation is
    # optional (moves the transcendental onto the EUP slot).
    if approximate:
        return jax.nn.gelu(x, approximate=True)
    return 0.5 * x * (1.0 + jax.lax.erf(x / _SQRT2))


def _partial_stats(h):
    """Per-tile moments, padded to an aligned (8, H) tile.

    Row 0: sum(h) over the tile rows.
    Row 1: sum((h - tile_mean)^2)   (tile-centered M2, for a cancellation-free
                                     parallel-variance combine in the wrapper).
    Rows 2..7: zeros, so the per-step store is a single unmasked full tile.
    """
    n_rows = h.shape[0]
    s = jnp.sum(h, axis=0, keepdims=True)                      # (1, H)
    mu = s * (1.0 / n_rows)
    m2 = jnp.sum(jnp.square(h - mu), axis=0, keepdims=True)    # (1, H)
    rows = jax.lax.broadcasted_iota(jnp.int32, (8, h.shape[1]), 0)
    return jnp.where(rows == 0, s, jnp.where(rows == 1, m2, 0.0))


# --------------------------------------------------------------------------
# Kernels
# --------------------------------------------------------------------------
def _linear_stats_only_kernel(x_ref, w_ref, stats_ref):
    """Pure reduction: per-tile BN stats of h = x @ W (h not stored)."""
    h = jnp.dot(x_ref[...], w_ref[...], preferred_element_type=jnp.float32)
    stats_ref[...] = _partial_stats(h)


def _linear_store_stats_kernel(x_ref, w_ref, h_out_ref, stats_ref):
    """h = x @ W stored as bf16, plus per-tile BN stats of h."""
    h = jnp.dot(x_ref[...], w_ref[...], preferred_element_type=jnp.float32)
    h_bf = h.astype(h_out_ref.dtype)
    h_out_ref[...] = h_bf
    stats_ref[...] = _partial_stats(h_bf.astype(jnp.float32))


def _recompute_bn_gelu_linear_stats_kernel(x_ref, w_in_ref, scale_ref,
                                           shift_ref, w_out_ref, h_out_ref,
                                           stats_ref, *, approximate_gelu):
    """h1 = x @ W_in (recomputed); out = GELU(h1*scale+shift) @ W_out (bf16),
    plus per-tile BN stats of out for the next pass."""
    h1 = jnp.dot(x_ref[...], w_in_ref[...], preferred_element_type=jnp.float32)
    a = _gelu(h1 * scale_ref[...] + shift_ref[...], approximate_gelu)
    h2 = jnp.dot(a.astype(jnp.bfloat16), w_out_ref[...],
                 preferred_element_type=jnp.float32)
    h2_bf = h2.astype(h_out_ref.dtype)
    h_out_ref[...] = h2_bf
    stats_ref[...] = _partial_stats(h2_bf.astype(jnp.float32))


def _bn_gelu_linear_stats_kernel(h_ref, scale_ref, shift_ref, w_ref,
                                 h_out_ref, stats_ref, *, approximate_gelu):
    """out = GELU(h*scale+shift) @ W (bf16), plus per-tile BN stats of out."""
    h = h_ref[...].astype(jnp.float32)
    a = _gelu(h * scale_ref[...] + shift_ref[...], approximate_gelu)
    h2 = jnp.dot(a.astype(jnp.bfloat16), w_ref[...],
                 preferred_element_type=jnp.float32)
    h2_bf = h2.astype(h_out_ref.dtype)
    h_out_ref[...] = h2_bf
    stats_ref[...] = _partial_stats(h2_bf.astype(jnp.float32))


def _bn_gelu_linear_bias_kernel(h_ref, scale_ref, shift_ref, w_ref, bias_ref,
                                out_ref, *, approximate_gelu):
    """out = GELU(h*scale+shift) @ W + bias  (final bottleneck projection)."""
    h = h_ref[...].astype(jnp.float32)
    a = _gelu(h * scale_ref[...] + shift_ref[...], approximate_gelu)
    out = jnp.dot(a.astype(jnp.bfloat16), w_ref[...],
                  preferred_element_type=jnp.float32)
    out_ref[...] = (out + bias_ref[...]).astype(out_ref.dtype)


# --------------------------------------------------------------------------
# Wrapper helpers
# --------------------------------------------------------------------------
def _fold_bn_stats(partials, gamma, beta, tile_n, n_total):
    """Combine per-tile (sum, centered-M2) partials into BN scale/shift.

    Chan's parallel-variance combine -> no E[x^2]-mean^2 cancellation.
    Biased variance, eps=1e-5 (PyTorch BatchNorm1d training-mode forward).
    """
    tile_sum = partials[:, 0, :]                          # (grid, H)
    tile_m2 = partials[:, 1, :]                           # (grid, H)
    mean = jnp.sum(tile_sum, axis=0) / n_total            # (H,)
    tile_mean = tile_sum / tile_n
    m2 = jnp.sum(tile_m2, axis=0) + tile_n * jnp.sum(
        jnp.square(tile_mean - mean[None, :]), axis=0)
    var = jnp.maximum(m2 / n_total, 0.0)
    inv_std = jax.lax.rsqrt(var + BN_EPS)
    scale = gamma.reshape(-1) * inv_std
    shift = beta.reshape(-1) - mean * scale
    return (scale.reshape(1, -1).astype(jnp.float32),
            shift.reshape(1, -1).astype(jnp.float32))


def _vmem_limit_bytes():
    cap = 128 * 1024 * 1024
    try:
        info = pltpu.get_tpu_info()
        cap = int(getattr(info, "vmem_capacity_bytes", cap) or cap)
    except Exception:
        pass
    # 3/4 of physical, capped - leaves headroom for compiler scratch.
    return min(cap * 3 // 4, 112 * 1024 * 1024)


def _pick_tile_n(n):
    for t in (1024, 512, 256, 128, 64, 32, 16):
        if n % t == 0:
            return t
    return n


# --------------------------------------------------------------------------
# Forward
# --------------------------------------------------------------------------
def dino_head_forward(x, params, *, tile_n=None, recompute_h1=None,
                      approximate_gelu=False):
    N, in_dim = x.shape
    hidden = params["w1"].shape[1]
    bottleneck = params["w3"].shape[1]

    assert hidden % 128 == 0 and bottleneck % 128 == 0, \
        "hidden/bottleneck must be lane-aligned (multiples of 128)"

    if tile_n is None:
        tile_n = _pick_tile_n(N)
    assert N % tile_n == 0, "batch size must be divisible by tile_n"
    assert tile_n == N or tile_n % 16 == 0, \
        "tile_n must be a multiple of 16 (bf16 sublane packing) or the full batch"
    n_tiles = N // tile_n
    grid = (n_tiles,)

    if recompute_h1 is None:
        # Recompute h1 = x @ w1 in pass 2 when re-reading x is cheaper than a
        # full (N, hidden) HBM write + read of h1.
        recompute_h1 = in_dim <= hidden

    # bf16 MXU inputs (cast once here), f32 accumulation inside the kernels.
    x_bf = x.astype(jnp.bfloat16)
    w1 = params["w1"].astype(jnp.bfloat16)
    w2 = params["w2"].astype(jnp.bfloat16)
    w3 = params["w3"].astype(jnp.bfloat16)

    vmem_limit = _vmem_limit_bytes()
    # Single-buffer the resident constants when double-buffering them would
    # eat most of the VMEM budget (hidden=4096 bf16 w2 = 32 MiB -> 64 MiB
    # double-buffered, which blows v7x's 64 MiB VMEM).
    largest_w_bytes = 2 * hidden * max(in_dim, hidden, bottleneck)
    single_buffer_consts = (2 * largest_w_bytes > vmem_limit // 2)
    # TODO(synk): for hidden >= 4096 on v7x, additionally tile w2 along its
    # output-feature axis instead of keeping it whole-resident in VMEM.

    def row_spec(d):
        return pl.BlockSpec((tile_n, d), lambda i: (i, 0))

    def const_spec(shape):
        idx = lambda i: (0,) * len(shape)
        if single_buffer_consts:
            return pl.BlockSpec(shape, idx, pipeline_mode=pl.Buffered(1))
        return pl.BlockSpec(shape, idx)

    # Grid-indexed per-tile stats output (no carried accumulator -> parallel).
    stats_spec = pl.BlockSpec((None, 8, hidden), lambda i: (i, 0, 0))
    stats_shape = jax.ShapeDtypeStruct((n_tiles, 8, hidden), jnp.float32)

    cparams = pltpu.CompilerParams(
        dimension_semantics=("parallel",),
        vmem_limit_bytes=vmem_limit)

    g1, be1 = params["g1"], params["be1"]
    g2, be2 = params["g2"], params["be2"]
    # Pre-BN biases b1/b2 are dropped: training-mode BN subtracts the batch
    # mean, so a constant per-feature bias cancels exactly.

    if recompute_h1:
        # ---- pass 1: stats of h1 = x @ w1 (h1 never written to HBM) ----
        stats1 = pl.pallas_call(
            _linear_stats_only_kernel,
            grid=grid,
            in_specs=[row_spec(in_dim), const_spec((in_dim, hidden))],
            out_specs=stats_spec,
            out_shape=stats_shape,
            compiler_params=cparams,
        )(x_bf, w1)
        scale1, shift1 = _fold_bn_stats(stats1, g1, be1, tile_n, N)

        # ---- pass 2: recompute h1, h2 = GELU(BN1(h1)) @ w2 + stats of h2 ----
        h2, stats2 = pl.pallas_call(
            functools.partial(_recompute_bn_gelu_linear_stats_kernel,
                              approximate_gelu=approximate_gelu),
            grid=grid,
            in_specs=[row_spec(in_dim), const_spec((in_dim, hidden)),
                      const_spec((1, hidden)), const_spec((1, hidden)),
                      const_spec((hidden, hidden))],
            out_specs=[row_spec(hidden), stats_spec],
            out_shape=(jax.ShapeDtypeStruct((N, hidden), jnp.bfloat16),
                       stats_shape),
            compiler_params=cparams,
        )(x_bf, w1, scale1, shift1, w2)
    else:
        # ---- pass 1: h1 = x @ w1 (bf16) + stats of h1 ----
        h1, stats1 = pl.pallas_call(
            _linear_store_stats_kernel,
            grid=grid,
            in_specs=[row_spec(in_dim), const_spec((in_dim, hidden))],
            out_specs=[row_spec(hidden), stats_spec],
            out_shape=(jax.ShapeDtypeStruct((N, hidden), jnp.bfloat16),
                       stats_shape),
            compiler_params=cparams,
        )(x_bf, w1)
        scale1, shift1 = _fold_bn_stats(stats1, g1, be1, tile_n, N)

        # ---- pass 2: h2 = GELU(BN1(h1)) @ w2 (bf16) + stats of h2 ----
        h2, stats2 = pl.pallas_call(
            functools.partial(_bn_gelu_linear_stats_kernel,
                              approximate_gelu=approximate_gelu),
            grid=grid,
            in_specs=[row_spec(hidden), const_spec((1, hidden)),
                      const_spec((1, hidden)), const_spec((hidden, hidden))],
            out_specs=[row_spec(hidden), stats_spec],
            out_shape=(jax.ShapeDtypeStruct((N, hidden), jnp.bfloat16),
                       stats_shape),
            compiler_params=cparams,
        )(h1, scale1, shift1, w2)

    scale2, shift2 = _fold_bn_stats(stats2, g2, be2, tile_n, N)

    # ---- pass 3: out = GELU(BN2(h2)) @ w3 + b3 ----
    out = pl.pallas_call(
        functools.partial(_bn_gelu_linear_bias_kernel,
                          approximate_gelu=approximate_gelu),
        grid=grid,
        in_specs=[row_spec(hidden), const_spec((1, hidden)),
                  const_spec((1, hidden)), const_spec((hidden, bottleneck)),
                  const_spec((1, bottleneck))],
        out_specs=row_spec(bottleneck),
        out_shape=jax.ShapeDtypeStruct((N, bottleneck), jnp.float32),
        compiler_params=cparams,
    )(h2, scale2, shift2, w3, params["b3"])

    return out


# --------------------------------------------------------------------------
# Parameter init (matches DINOHead._init_weights) and references
# --------------------------------------------------------------------------
def init_params(key, in_dim, hidden_dim, bottleneck_dim):
    """Linear weights ~ trunc_normal(std=0.02), biases = 0, BN gamma=1, beta=0."""
    k1, k2, k3 = jax.random.split(key, 3)

    def trunc_normal(k, shape, std=0.02):
        return (jax.random.truncated_normal(k, -2.0 / std, 2.0 / std, shape,
                                            dtype=jnp.float32) * std)

    return {
        # weights stored as (in, out)
        "w1": trunc_normal(k1, (in_dim, hidden_dim)),
        "b1": jnp.zeros((1, hidden_dim), jnp.float32),   # unused: cancelled by BN1
        "g1": jnp.ones((1, hidden_dim), jnp.float32),
        "be1": jnp.zeros((1, hidden_dim), jnp.float32),
        "w2": trunc_normal(k2, (hidden_dim, hidden_dim)),
        "b2": jnp.zeros((1, hidden_dim), jnp.float32),   # unused: cancelled by BN2
        "g2": jnp.ones((1, hidden_dim), jnp.float32),
        "be2": jnp.zeros((1, hidden_dim), jnp.float32),
        "w3": trunc_normal(k3, (hidden_dim, bottleneck_dim)),
        "b3": jnp.zeros((1, bottleneck_dim), jnp.float32),
    }


def _bn_train_ref(h, gamma, beta):
    mean = jnp.mean(h, axis=0, keepdims=True)
    var = jnp.mean(jnp.square(h - mean), axis=0, keepdims=True)
    return (h - mean) * jax.lax.rsqrt(var + BN_EPS) * gamma + beta


def dino_head_reference_f32(x, params):
    """Pure-JAX f32 reference with the exact module semantics."""
    h = x @ params["w1"] + params["b1"]
    h = _gelu(_bn_train_ref(h, params["g1"], params["be1"]))
    h = h @ params["w2"] + params["b2"]
    h = _gelu(_bn_train_ref(h, params["g2"], params["be2"]))
    return h @ params["w3"] + params["b3"]


def dino_head_reference_mixed(x, params):
    """Pure-JAX reference mirroring the kernel's bf16-matmul / bf16-intermediate
    policy (f32 accumulation, bf16 storage of the inter-pass activations)."""
    w1 = params["w1"].astype(jnp.bfloat16)
    w2 = params["w2"].astype(jnp.bfloat16)
    w3 = params["w3"].astype(jnp.bfloat16)
    xb = x.astype(jnp.bfloat16)
    h = jnp.dot(xb, w1, preferred_element_type=jnp.float32)
    h = h.astype(jnp.bfloat16).astype(jnp.float32)
    h = _gelu(_bn_train_ref(h, params["g1"], params["be1"]))
    h = jnp.dot(h.astype(jnp.bfloat16), w2, preferred_element_type=jnp.float32)
    h = h.astype(jnp.bfloat16).astype(jnp.float32)
    h = _gelu(_bn_train_ref(h, params["g2"], params["be2"]))
    out = jnp.dot(h.astype(jnp.bfloat16), w3, preferred_element_type=jnp.float32)
    return out + params["b3"]


if __name__ == "__main__":
    # Small TPU-friendly shapes consistent with the module (lanes multiple of
    # 128, batch a multiple of the 16-row bf16 tile so the grid is exercised).
    N, IN_DIM, HIDDEN_DIM, BOTTLENECK_DIM = 64, 128, 256, 128

    key = jax.random.PRNGKey(0)
    kx, kp = jax.random.split(key)
    x = jax.random.normal(kx, (N, IN_DIM), dtype=jnp.float32)
    params = init_params(kp, IN_DIM, HIDDEN_DIM, BOTTLENECK_DIM)

    # Exercise both structural variants: recompute-h1 (default when
    # in_dim <= hidden) and stored-h1.
    out_rc = jax.block_until_ready(
        dino_head_forward(x, params, tile_n=16, recompute_h1=True))
    out_st = jax.block_until_ready(
        dino_head_forward(x, params, tile_n=16, recompute_h1=False))
    assert out_rc.shape == (N, BOTTLENECK_DIM)
    assert out_st.shape == (N, BOTTLENECK_DIM)

    ref_mixed = dino_head_reference_mixed(x, params)
    ref_f32 = dino_head_reference_f32(x, params)

    for out in (out_rc, out_st):
        # Tight check vs a reference mirroring the kernel's bf16 policy.
        assert jnp.allclose(out, ref_mixed, atol=2e-2, rtol=2e-2), \
            "mismatch vs bf16-mirrored reference"
        # Loose check vs the full-f32 module semantics (bf16 MXU inputs and
        # bf16 intermediates introduce small, expected deviations).
        assert jnp.allclose(out, ref_f32, atol=1e-1, rtol=1e-1), \
            "mismatch vs f32 reference"

    print("KERNEL_OK")
</pallas_src>

<mosaic_0001>
module attributes {stable_mosaic.version = 11 : i64} {
  func.func @_linear_stats_only_kernel(%arg0: i32, %arg1: memref<16x128xbf16, #tpu.memory_space<vmem>>, %arg2: memref<128x256xbf16, #tpu.memory_space<vmem>>, %arg3: memref<1x8x256xf32, #tpu.memory_space<vmem>>) attributes {dimension_semantics = [#tpu.dimension_semantics<parallel>], iteration_bounds = array<i64: 4>, scalar_prefetch = 0 : i64, scratch_operands = 0 : i64, tpu.core_type = #tpu.core_type<tc>, window_params = [{transform_indices = @transform_0, window_bounds = array<i64: 16, 128>}, {pipeline_mode = #tpu.pipeline_mode<synchronous>, transform_indices = @transform_1, window_bounds = array<i64: 128, 256>}, {transform_indices = @transform_2, window_bounds = array<i64: 1, 8, 256>}]} {
    %c0 = arith.constant 0 : index
    %c0_0 = arith.constant 0 : index
    %0 = vector.load %arg1[%c0, %c0_0] : memref<16x128xbf16, #tpu.memory_space<vmem>>, vector<16x128xbf16>
    %c0_1 = arith.constant 0 : index
    %c0_2 = arith.constant 0 : index
    %1 = vector.load %arg2[%c0_1, %c0_2] : memref<128x256xbf16, #tpu.memory_space<vmem>>, vector<128x256xbf16>
    %cst = arith.constant dense<0.000000e+00> : vector<16x256xf32>
    %2 = tpu.matmul %0, %1, %cst {dimension_numbers = #tpu.dot_dimension_numbers<[1], [0], [0], [1], [0, 0, 1, 1], [], []>} : vector<16x128xbf16>, vector<128x256xbf16>, vector<16x256xf32> -> vector<16x256xf32>
    %cst_3 = arith.constant dense<0.000000e+00> : vector<256xf32>
    %3 = vector.multi_reduction <add>, %2, %cst_3 [0] : vector<16x256xf32> to vector<256xf32>
    %4 = vector.shape_cast %3 : vector<256xf32> to vector<1x256xf32>
    %cst_4 = arith.constant 6.250000e-02 : f32
    %5 = vector.broadcast %cst_4 : f32 to vector<1x256xf32>
    %6 = arith.mulf %4, %5 : vector<1x256xf32>
    %7 = vector.broadcast %6 : vector<1x256xf32> to vector<16x256xf32>
    %8 = arith.subf %2, %7 : vector<16x256xf32>
    %9 = arith.mulf %8, %8 : vector<16x256xf32>
    %cst_5 = arith.constant dense<0.000000e+00> : vector<256xf32>
    %10 = vector.multi_reduction <add>, %9, %cst_5 [0] : vector<16x256xf32> to vector<256xf32>
    %11 = vector.shape_cast %10 : vector<256xf32> to vector<1x256xf32>
    %12 = tpu.iota {dimensions = array<i32: 0>} : vector<8x256xi32>
    %c0_i32 = arith.constant 0 : i32
    %13 = vector.broadcast %c0_i32 : i32 to vector<8x256xi32>
    %14 = arith.cmpi eq, %12, %13 : vector<8x256xi32>
    %c1_i32 = arith.constant 1 : i32
    %15 = vector.broadcast %c1_i32 : i32 to vector<8x256xi32>
    %16 = arith.cmpi eq, %12, %15 : vector<8x256xi32>
    %cst_6 = arith.constant 0.000000e+00 : f32
    %17 = vector.shape_cast %11 : vector<1x256xf32> to vector<1x256xf32>
    %18 = vector.broadcast %17 : vector<1x256xf32> to vector<8x256xf32>
    %19 = vector.broadcast %cst_6 : f32 to vector<8x256xf32>
    %20 = arith.select %16, %18, %19 : vector<8x256xi1>, vector<8x256xf32>
    %21 = vector.shape_cast %4 : vector<1x256xf32> to vector<1x256xf32>
    %22 = vector.broadcast %21 : vector<1x256xf32> to vector<8x256xf32>
    %23 = arith.select %14, %22, %20 : vector<8x256xi1>, vector<8x256xf32>
    %c0_7 = arith.constant 0 : index
    %c0_8 = arith.constant 0 : index
    %c0_9 = arith.constant 0 : index
    %24 = vector.load %arg3[%c0_7, %c0_8, %c0_9] : memref<1x8x256xf32, #tpu.memory_space<vmem>>, vector<1x8x256xf32>
    %25 = vector.shape_cast %24 : vector<1x8x256xf32> to vector<8x256xf32>
    %26 = vector.shape_cast %23 : vector<8x256xf32> to vector<1x8x256xf32>
    tpu.vector_store %arg3[%c0_7, %c0_8, %c0_9], %26 {strides = array<i32>} : memref<1x8x256xf32, #tpu.memory_space<vmem>>, vector<1x8x256xf32>,
    return
  }
  func.func @transform_0(%arg0: i32) -> (i32, i32) {
    %c0_i32 = arith.constant 0 : i32
    %c0_i32_0 = arith.constant 0 : i32
    return %arg0, %c0_i32 : i32, i32
  }
  func.func @transform_1(%arg0: i32) -> (i32, i32) {
    %c0_i32 = arith.constant 0 : i32
    %c0_i32_0 = arith.constant 0 : i32
    %c0_i32_1 = arith.constant 0 : i32
    return %c0_i32, %c0_i32_0 : i32, i32
  }
  func.func @transform_2(%arg0: i32) -> (i32, i32, i32) {
    %c0_i32 = arith.constant 0 : i32
    %c0_i32_0 = arith.constant 0 : i32
    %c0_i32_1 = arith.constant 0 : i32
    return %arg0, %c0_i32, %c0_i32_0 : i32, i32, i32
  }
}

</mosaic_0001>

<llo_original>
// kernel: tpu_custom_call.1
$region0: #{tpu_custom_call.1}
  #allocation0 [shape = 'u32[]', space=smem, size = 0x4, offset = 0x4, fixed_abs, tag = 'smem constant byte address 0x4 - core index']
  #allocation1 [shape = 'u32[144,128]{1,0:T(1,128)}', space=vmem, size = 0x12000, scoped, tag = 'internal scratch']
  %s0 = inlined_call_operand.hbm [shape: bf16[64,128], index: 0, kind: input, shape index: {}]
  %s1 = inlined_call_operand.hbm [shape: bf16[128,256], index: 1, kind: input, shape index: {}]
  %s2 = inlined_call_operand.hbm [shape: f32[4,8,256], index: 2, kind: output, shape index: {}]
  %s3 = sld [smem:[#allocation0]]
  $region49: #{tpu_custom_call.1} parent=0
    _
  %s5 = ssub.s32 1, %s3
  %s6 = scalar_select 0, %s5, %s3
  $region1: #{tpu_custom_call.1} parent=0
    #allocation2 [shape = 'u8[8192]{0}', space=vmem, size = 0x2000, scoped, tag = 'input window, operand 0']
    #allocation3 [shape = 's32[2]{0}', space=sflag, size = 0x8, scoped, tag = 'scoped memory for tpu_custom_call.1']
    #allocation4 [shape = 's32[2]{0}', space=sflag, size = 0x8, scoped, tag = 'scoped memory for tpu_custom_call.1']
    #allocation5 [shape = 'u8[65536]{0}', space=vmem, size = 0x10000, scoped, tag = 'input window, operand 1, single buffered']
    #allocation6 [shape = 's32[1]{0}', space=sflag, size = 0x4, scoped, tag = 'scoped memory for tpu_custom_call.1']
    #allocation7 [shape = 'u8[16384]{0}', space=vmem, size = 0x4000, scoped, tag = 'output window, operand 0']
    %7 = vsyncpa [#allocation3], 0
    %s8 = scalar_lea.sflag [#allocation3], 1
    %9 = vsyncpa %s8, 0
    %10 = vsyncpa [#allocation6], 0
    %11 = vsyncpa [#allocation4], 0
    %s12 = scalar_lea.sflag [#allocation4], 1
    %13 = vsyncpa %s12, 0
    loop: start=0, step=1, limit=6
    $region2: #{tpu_custom_call.1} parent=1 // loop_pre_header
      _
    $region3: #{tpu_custom_call.1} parent=1 // loop_header
      %s15 = sphi 0, %s19
      %p16 = scmp.ge.s32.totalorder %s15, 6
      %s25 = sphi 0, %s27
      %s28 = sphi 0, %s25
      %s29 = sphi 0, %s28
      %s45 = sphi 0, %s29
      %s49 = sphi 0, %s49
      %s51 = sphi 0, %s49
      %s52 = sphi 0, %s51
      %s66 = sphi 0, %s52
      %s72 = sphi 0, %s74
      %s75 = sphi 0, %s72
      %s76 = sphi 0, %s75
      %s92 = sphi 0, %s76
    $region4: #{tpu_custom_call.1} parent=1 // loop_header_branch
      %18 = sbr.rel (%p16) target = $region8
    $region5: #{tpu_custom_call.1} parent=1 // loop_body
      %s20 = ssub.s32 %s15, 1
      %s21 = ssub.s32 %s15, 2
      %s22 = sadd.s32 %s15, 1
      %s23 = ssub.s32 %s15, %s22
      %p24 = scmp.eq.s32.totalorder %s23, 0
      %s26 = sadd.s32 %s25, 1
      %s27 = scalar_select %p24, %s25, %s26
      %p30 = pneg %p24
      %p31 = scmp.eq.s32.totalorder %s15, 3
      %p32 = por %p30, %p31
      %p33 = scmp.ne.s32.totalorder %s25, %s28
      %p34 = scmp.eq.s32.totalorder %s15, 0
      %p35 = por %p33, %p34
      %p36 = scmp.ne.s32.totalorder %s25, %s28
      %p37 = scmp.eq.s32.totalorder %s20, 3
      %p38 = por %p36, %p37
      %p39 = scmp.ne.s32.totalorder %s28, %s29
      %p40 = scmp.eq.s32.totalorder %s20, 0
      %p41 = por %p39, %p40
      %p42 = scmp.ne.s32.totalorder %s28, %s29
      %p43 = scmp.eq.s32.totalorder %s21, 3
      %p44 = por %p42, %p43
      %p46 = scmp.ne.s32.totalorder %s29, %s45
      %p47 = scmp.eq.s32.totalorder %s21, 0
      %p48 = por %p46, %p47
      %s50 = sadd.s32 %s49, 1
      %p53 = scmp.eq.s32.totalorder %s15, 3
      %p54 = scmp.ne.s32.totalorder %s49, %s51
      %p55 = scmp.eq.s32.totalorder %s15, 0
      %p56 = por %p54, %p55
      %p57 = scmp.ne.s32.totalorder %s49, %s51
      %p58 = scmp.eq.s32.totalorder %s20, 3
      %p59 = por %p57, %p58
      %p60 = scmp.ne.s32.totalorder %s51, %s52
      %p61 = scmp.eq.s32.totalorder %s20, 0
      %p62 = por %p60, %p61
      %p63 = scmp.ne.s32.totalorder %s51, %s52
      %p64 = scmp.eq.s32.totalorder %s21, 3
      %p65 = por %p63, %p64
      %p67 = scmp.ne.s32.totalorder %s52, %s66
      %p68 = scmp.eq.s32.totalorder %s21, 0
      %p69 = por %p67, %p68
      %s70 = ssub.s32 %s15, %s22
      %p71 = scmp.eq.s32.totalorder %s70, 0
      %s73 = sadd.s32 %s72, 1
      %s74 = scalar_select %p71, %s72, %s73
      %p77 = pneg %p71
      %p78 = scmp.eq.s32.totalorder %s15, 3
      %p79 = por %p77, %p78
      %p80 = scmp.ne.s32.totalorder %s72, %s75
      %p81 = scmp.eq.s32.totalorder %s15, 0
      %p82 = por %p80, %p81
      %p83 = scmp.ne.s32.totalorder %s72, %s75
      %p84 = scmp.eq.s32.totalorder %s20, 3
      %p85 = por %p83, %p84
      %p86 = scmp.ne.s32.totalorder %s75, %s76
      %p87 = scmp.eq.s32.totalorder %s20, 0
      %p88 = por %p86, %p87
      %p89 = scmp.ne.s32.totalorder %s75, %s76
      %p90 = scmp.eq.s32.totalorder %s21, 3
      %p91 = por %p89, %p90
      %p93 = scmp.ne.s32.totalorder %s76, %s92
      %p94 = scmp.eq.s32.totalorder %s21, 0
      %p95 = por %p93, %p94
      %p96 = scmp.le.s32.totalorder 1, %s15
      %p97 = scmp.lt.s32.totalorder %s15, 5
      %p98 = pnand %p96, %p97
      %p99 = pneg %p98
      // Predicated region
      $region9: #{tpu_custom_call.1} parent=5 // pred_check
        _
      $region10: #{tpu_custom_call.1} parent=5 // pred_check_branch
        %101 = sbr.rel (%p98) target = $region12
      $region11: #{tpu_custom_call.1} parent=5 // pred_region
        %s102 = ssub.s32 %s15, 1
        // Predicated region
        $region13: #{tpu_custom_call.1} parent=11 // pred_check
          %p103 = pneg %p62
        $region14: #{tpu_custom_call.1} parent=11 // pred_check_branch
          %105 = sbr.rel (%p103) target = $region16
        $region15: #{tpu_custom_call.1} parent=11 // pred_region
          %s107 = ssub.s32 2048, 2048
          %108 = vsyncadd [#allocation6], %s107
          %s109 = sshll.u32 [#allocation5], 4
          %s110 = int_to_ptr.vmem [resolvable:$true] %s109
          %115 = dma.hbm_to_vmem [thread:$0]  %s1, 2048, %s110, [#allocation6], 128, 128, 8
        $region16: #{tpu_custom_call.1} parent=11 // pred_fallthru
          _
      $region12: #{tpu_custom_call.1} parent=5 // pred_fallthru
        _
      %p116 = scmp.lt.s32.totalorder %s15, 4
      // Predicated region
      $region17: #{tpu_custom_call.1} parent=5 // pred_check
        %p117 = pneg %p116
      $region18: #{tpu_custom_call.1} parent=5 // pred_check_branch
        %119 = sbr.rel (%p117) target = $region20
      $region19: #{tpu_custom_call.1} parent=5 // pred_region
        // Predicated region
        $region21: #{tpu_custom_call.1} parent=19 // pred_check
          %p120 = pneg %p35
        $region22: #{tpu_custom_call.1} parent=19 // pred_check_branch
          %122 = sbr.rel (%p120) target = $region24
        $region23: #{tpu_custom_call.1} parent=19 // pred_region
          %s123 = sand.u32 %s25, 1
          %s124 = scalar_lea.sflag [#allocation3], %s123
          %s125 = sand.u32 %s25, 1
          %s126 = smul.addr %s125, 8
          %s127 = scalar_lea.vmem [#allocation2], %s126
          %s128 = smul.u32 2, %s15
          %s130 = ssub.s32 128, 128
          %131 = vsyncadd %s124, %s130
          %s132 = smul.addr %s128, 64
          %s133 = scalar_lea.hbm %s0, %s132
          %s134 = sshll.u32 %s127, 4
          %s135 = int_to_ptr.vmem [resolvable:$true] %s134
          %140 = dma.hbm_to_vmem [thread:$0]  %s133, 128, %s135, %s124, 64, 64, 4
        $region24: #{tpu_custom_call.1} parent=19 // pred_fallthru
          _
      $region20: #{tpu_custom_call.1} parent=5 // pred_fallthru
        _
      %p141 = scmp.le.s32.totalorder 1, %s15
      %p142 = scmp.lt.s32.totalorder %s15, 5
      %p143 = pnand %p141, %p142
      %p144 = pneg %p143
      // Predicated region
      $region25: #{tpu_custom_call.1} parent=5 // pred_check
        _
      $region26: #{tpu_custom_call.1} parent=5 // pred_check_branch
        %146 = sbr.rel (%p143) target = $region28
      $region27: #{tpu_custom_call.1} parent=5 // pred_region
        %s147 = ssub.s32 %s15, 1
        %s148 = sand.u32 %s28, 1
        %s149 = scalar_lea.sflag [#allocation3], %s148
        %s150 = sand.u32 %s28, 1
        %s151 = smul.addr %s150, 8
        %s152 = scalar_lea.vmem [#allocation2], %s151
        // Predicated region
        $region29: #{tpu_custom_call.1} parent=27 // pred_check
          %p153 = pneg %p41
        $region30: #{tpu_custom_call.1} parent=27 // pred_check_branch
          %155 = sbr.rel (%p153) target = $region32
        $region31: #{tpu_custom_call.1} parent=27 // pred_region
          %156 = dma.done %s149, 128
        $region32: #{tpu_custom_call.1} parent=27 // pred_fallthru
          _
        // Predicated region
        $region33: #{tpu_custom_call.1} parent=27 // pred_check
          %p157 = pneg %p62
        $region34: #{tpu_custom_call.1} parent=27 // pred_check_branch
          %159 = sbr.rel (%p157) target = $region36
        $region35: #{tpu_custom_call.1} parent=27 // pred_region
          %160 = dma.done [#allocation6], 2048
        $region36: #{tpu_custom_call.1} parent=27 // pred_fallthru
          _
        %s161 = sand.u32 %s28, 1
        %s162 = scalar_lea.sflag [#allocation3], %s161
        %s163 = sand.u32 %s28, 1
        %s164 = smul.addr %s163, 8
        %s165 = scalar_lea.vmem [#allocation2], %s164
        %p166 = pneg %p41
        %p167 = pneg %p38
        %p168 = pneg %p62
        %p169 = pneg %p59
        %p170 = pneg %p88
        %p171 = pneg %p85
        %s172 = sand.u32 %s75, 1
        %s173 = scalar_lea.sflag [#allocation4], %s172
        %s174 = sand.u32 %s75, 1
        %s175 = smul.addr %s174, 16
        %s176 = scalar_lea.vmem [#allocation7], %s175
        %s177 = smul.u32 2, %s20
        %v179 = vld [vmem:[%s152] sm:$0xf]
        %v180 = vld [vmem:[%s152 + $0x4] sm:$0xf]
        %v181 = vld [vmem:[#allocation5] sm:$0xff]
        %v182 = vld [vmem:[#allocation5 + $0x8] sm:$0xff]
        %v183 = vld [vmem:[#allocation5 + $0x10] sm:$0xff]
        %v184 = vld [vmem:[#allocation5 + $0x18] sm:$0xff]
        %v185 = vld [vmem:[#allocation5 + $0x20] sm:$0xff]
        %v186 = vld [vmem:[#allocation5 + $0x28] sm:$0xff]
        %v187 = vld [vmem:[#allocation5 + $0x30] sm:$0xff]
        %v188 = vld [vmem:[#allocation5 + $0x38] sm:$0xff]
        %v189 = vld [vmem:[#allocation5 + $0x40] sm:$0xff]
        %v190 = vld [vmem:[#allocation5 + $0x48] sm:$0xff]
        %v191 = vld [vmem:[#allocation5 + $0x50] sm:$0xff]
        %v192 = vld [vmem:[#allocation5 + $0x58] sm:$0xff]
        %v193 = vld [vmem:[#allocation5 + $0x60] sm:$0xff]
        %v194 = vld [vmem:[#allocation5 + $0x68] sm:$0xff]
        %v195 = vld [vmem:[#allocation5 + $0x70] sm:$0xff]
        %v196 = vld [vmem:[#allocation5 + $0x78] sm:$0xff]
        %v199 = vunpack.c.l.b16 %v179
        %v200 = vunpack.c.l.b16 %v180
        %v201 = vpack.c.b16 %v200, %v199
        %v219 = vunpack.c.l.b16 %v181
        %v220 = vunpack.c.h.b16 %v181
        %v221 = vunpack.c.l.b16 %v182
        %v222 = vunpack.c.h.b16 %v182
        %v223 = vunpack.c.l.b16 %v183
        %v224 = vunpack.c.h.b16 %v183
        %v225 = vunpack.c.l.b16 %v184
        %v226 = vunpack.c.h.b16 %v184
        %v227 = vunpack.c.l.b16 %v185
        %v228 = vunpack.c.h.b16 %v185
        %v229 = vunpack.c.l.b16 %v186
        %v230 = vunpack.c.h.b16 %v186
        %v231 = vunpack.c.l.b16 %v187
        %v232 = vunpack.c.h.b16 %v187
        %v233 = vunpack.c.l.b16 %v188
        %v234 = vunpack.c.h.b16 %v188
        %v235 = vunpack.c.l.b16 %v189
        %v236 = vunpack.c.h.b16 %v189
        %v237 = vunpack.c.l.b16 %v190
        %v238 = vunpack.c.h.b16 %v190
        %v239 = vunpack.c.l.b16 %v191
        %v240 = vunpack.c.h.b16 %v191
        %v241 = vunpack.c.l.b16 %v192
        %v242 = vunpack.c.h.b16 %v192
        %v243 = vunpack.c.l.b16 %v193
        %v244 = vunpack.c.h.b16 %v193
        %v245 = vunpack.c.l.b16 %v194
        %v246 = vunpack.c.h.b16 %v194
        %v247 = vunpack.c.l.b16 %v195
        %v248 = vunpack.c.h.b16 %v195
        %v249 = vunpack.c.l.b16 %v196
        %v250 = vunpack.c.h.b16 %v196
        %v251 = vpack.c.b16 %v221, %v219
        %v252 = vpack.c.b16 %v222, %v220
        %v253 = vpack.c.b16 %v225, %v223
        %v254 = vpack.c.b16 %v226, %v224
        %v255 = vpack.c.b16 %v229, %v227
        %v256 = vpack.c.b16 %v230, %v228
        %v257 = vpack.c.b16 %v233, %v231
        %v258 = vpack.c.b16 %v234, %v232
        %v259 = vpack.c.b16 %v237, %v235
        %v260 = vpack.c.b16 %v238, %v236
        %v261 = vpack.c.b16 %v241, %v239
        %v262 = vpack.c.b16 %v242, %v240
        %v263 = vpack.c.b16 %v245, %v243
        %v264 = vpack.c.b16 %v246, %v244
        %v265 = vpack.c.b16 %v249, %v247
        %v266 = vpack.c.b16 %v250, %v248
        %283 = vmatprep.subr.bf16.mxu0 %v266
        %284 = vmatpush1.bf16.msra.mxu0 %v265
        %285 = vmatprep.subr.bf16.mxu0 %v264
        %286 = vmatpush1.bf16.msra.mxu0 %v263
        %287 = vmatprep.subr.bf16.mxu0 %v262
        %288 = vmatpush1.bf16.msra.mxu0 %v261
        %289 = vmatprep.subr.bf16.mxu0 %v260
        %290 = vmatpush1.bf16.msra.mxu0 %v259
        %291 = vmatprep.subr.bf16.mxu0 %v258
        %292 = vmatpush1.bf16.msra.mxu0 %v257
        %293 = vmatprep.subr.bf16.mxu0 %v256
        %294 = vmatpush1.bf16.msra.mxu0 %v255
        %295 = vmatprep.subr.bf16.mxu0 %v254
        %296 = vmatpush1.bf16.msra.mxu0 %v253
        %297 = vmatprep.subr.bf16.mxu0 %v252
        %298 = vmatpush1.bf16.msra.mxu0 %v251
        %299 = vmatprep.subr.bf16.mxu0 0
        %300 = vmatpush2.bf16.msra.mxu0 0
        %301 = vmatprep.subr.bf16.mxu0 0
        %302 = vmatpush2.bf16.msra.mxu0 0
        %303 = vmatprep.subr.bf16.mxu0 0
        %304 = vmatpush2.bf16.msra.mxu0 0
        %305 = vmatprep.subr.bf16.mxu0 0
        %306 = vmatpush2.bf16.msra.mxu0 0
        %307 = vmatprep.subr.bf16.mxu0 0
        %308 = vmatpush2.bf16.msra.mxu0 0
        %309 = vmatprep.subr.bf16.mxu0 0
        %310 = vmatpush2.bf16.msra.mxu0 0
        %311 = vmatprep.subr.bf16.mxu0 0
        %312 = vmatpush2.bf16.msra.mxu0 0
        %313 = vmatprep.subr.bf16.mxu0 0
        %314 = vmatpush2.bf16.msra.mxu0 0
        %315 = vmatprep.mubr.bf16.mxu0 0
        %316 = vmatmul.mubr.bf16.gmra.mxu0 %v201
        %v317 = vpop.f32.mrf.mxu0
        %v318 = vadd.f32 0.0, %v317
        %v319 = vpop.f32.mrf.mxu0
        %v320 = vadd.f32 0.0, %v319
        %v321 = vpop.f32.mrf.mxu0
        %v322 = vadd.f32 0.0, %v321
        %v323 = vpop.f32.mrf.mxu0
        %v324 = vadd.f32 0.0, %v323
        %325 = vdwg.mxu0
        %v326 = vadd.f32 %v318, %v322
        %v327 = vrot.slane %v326, 4
        %v328 = vadd.f32 %v326, %v327
        %v329 = vrot.slane %v328, 2
        %v330 = vadd.f32 %v328, %v329
        %v331 = vrot.slane %v330, 1
        %v332 = vadd.f32 %v330, %v331
        %v333 = vadd.f32 %v320, %v324
        %v334 = vrot.slane %v333, 4
        %v335 = vadd.f32 %v333, %v334
        %v336 = vrot.slane %v335, 2
        %v337 = vadd.f32 %v335, %v336
        %v338 = vrot.slane %v337, 1
        %v339 = vadd.f32 %v337, %v338
        %v340 = vmul.f32 %v332, 0.0625
        %v341 = vmul.f32 %v339, 0.0625
        %v342 = vsub.f32 %v318, %v340
        %v343 = vsub.f32 %v320, %v341
        %v344 = vsub.f32 %v322, %v340
        %v345 = vsub.f32 %v324, %v341
        %v346 = vmul.f32 %v342, %v342
        %v347 = vmul.f32 %v343, %v343
        %v348 = vmul.f32 %v344, %v344
        %v349 = vmul.f32 %v345, %v345
        %v350 = vadd.f32 %v346, %v348
        %v351 = vrot.slane %v350, 4
        %v352 = vadd.f32 %v350, %v351
        %v353 = vrot.slane %v352, 2
        %v354 = vadd.f32 %v352, %v353
        %v355 = vrot.slane %v354, 1
        %v356 = vadd.f32 %v354, %v355
        %v357 = vadd.f32 %v347, %v349
        %v358 = vrot.slane %v357, 4
        %v359 = vadd.f32 %v357, %v358
        %v360 = vrot.slane %v359, 2
        %v361 = vadd.f32 %v359, %v360
        %v362 = vrot.slane %v361, 1
        %v363 = vadd.f32 %v361, %v362
        %v364 = vlaneseq
        %v365 = vshrl.u32 %v364, 7
        %vm366 = vcmp.eq.s32.totalorder %v365, 0
        %vm367 = vcmp.eq.s32.totalorder %v365, 1
        %v368 = vsel %vm367, %v356, 0.0
        %v369 = vsel %vm367, %v363, 0.0
        %v370 = vsel %vm366, %v332, %v368
        %v371 = vsel %vm366, %v339, %v369
        %372 = vst [vmem:[%s176] sm:$0xff] %v370
        %373 = vst [vmem:[%s176 + $0x8] sm:$0xff] %v371
        %s374 = sand.u32 %s75, 1
        %s375 = scalar_lea.sflag [#allocation4], %s374
        %s376 = sand.u32 %s75, 1
        %s377 = smul.addr %s376, 16
        %s378 = scalar_lea.vmem [#allocation7], %s377
        // Predicated region
        $region37: #{tpu_custom_call.1} parent=27 // pred_check
          %p379 = pneg %p85
        $region38: #{tpu_custom_call.1} parent=27 // pred_check_branch
          %381 = sbr.rel (%p379) target = $region40
        $region39: #{tpu_custom_call.1} parent=27 // pred_region
          %s383 = ssub.s32 256, 256
          %384 = vsyncadd %s375, %s383
          %s385 = smul.addr %s20, 2
          %s386 = smul.addr %s385, 128
          %s387 = scalar_lea.hbm %s2, %s386
          %s389 = sshll.u32 %s378, 4
          %s390 = int_to_ptr.vmem [resolvable:$true] %s389
          %392 = dma.vmem_to_hbm [thread:$0]  %s390, 256, %s387, %s375
        $region40: #{tpu_custom_call.1} parent=27 // pred_fallthru
          _
      $region28: #{tpu_custom_call.1} parent=5 // pred_fallthru
        _
      %p393 = scmp.le.s32.totalorder 2, %s15
      // Predicated region
      $region41: #{tpu_custom_call.1} parent=5 // pred_check
        %p394 = pneg %p393
      $region42: #{tpu_custom_call.1} parent=5 // pred_check_branch
        %396 = sbr.rel (%p394) target = $region44
      $region43: #{tpu_custom_call.1} parent=5 // pred_region
        %s397 = ssub.s32 %s15, 2
        // Predicated region
        $region45: #{tpu_custom_call.1} parent=43 // pred_check
          %p398 = pneg %p91
        $region46: #{tpu_custom_call.1} parent=43 // pred_check_branch
          %400 = sbr.rel (%p398) target = $region48
        $region47: #{tpu_custom_call.1} parent=43 // pred_region
          %s401 = sand.u32 %s76, 1
          %s402 = scalar_lea.sflag [#allocation4], %s401
          %s403 = sand.u32 %s76, 1
          %s404 = smul.addr %s403, 16
          %s405 = scalar_lea.vmem [#allocation7], %s404
          %406 = dma.done %s402, 256
        $region48: #{tpu_custom_call.1} parent=43 // pred_fallthru
          _
      $region44: #{tpu_custom_call.1} parent=5 // pred_fallthru
        _
    $region6: #{tpu_custom_call.1} parent=1 // loop_footer
      %s19 = sadd.s32 1, %s15
    $region7: #{tpu_custom_call.1} parent=1 // loop_footer_branch
      %14 = sbr.rel target = $region3
    $region8: #{tpu_custom_call.1} parent=1 // loop_exit
      _
    %407 = vsyncpa [#allocation3], 1
    %s408 = scalar_lea.sflag [#allocation3], 1
    %409 = vsyncpa %s408, 1
    %410 = vsyncpa [#allocation6], 1
    %411 = vsyncpa [#allocation4], 1
    %s412 = scalar_lea.sflag [#allocation4], 1
    %413 = vsyncpa %s412, 1

</llo_original>
